<compile_context>
chip_gen: v7x
topology: tpu7x:2x2x1
jax: 0.10.0
libtpu: 0.0.40
codegen_flags: <defaults>
</compile_context>

<pallas_src>
import functools

import jax
import jax.numpy as jnp
from jax.experimental import pallas as pl
from jax.experimental.pallas import tpu as pltpu


LANE = 128  # minor (feature / class) dims padded to lane width


def _round_up(x, m):
    return (x + m - 1) // m * m


def _vmem_budget_bytes():
    """Generation-aware scoped-VMEM budget (v5e/v6e: 128 MiB phys, v7x: 64 MiB)."""
    cap = 64 * 1024 * 1024  # conservative fallback (v7x per-core VMEM)
    try:
        info = pltpu.get_tpu_info()
        cap = int(getattr(info, "vmem_capacity_bytes", cap))
    except Exception:
        pass
    # ~80% of physical, capped at 100 MiB -> ~51 MiB on v7x, 100 MiB on v5e/v6e.
    return min(int(cap * 0.8), 100 * 1024 * 1024)


# ----------------------------- fused single-kernel path ------------------------------
def fused_gcn_kernel(a_ref, x_ref, w1_ref, b1_ref, w2_ref, b2_ref, o_ref, *, num_classes):
    # conv1 linear (bias applied before aggregation, as in the module)
    h = jnp.dot(x_ref[...], w1_ref[...], preferred_element_type=jnp.float32) + b1_ref[...]
    # conv1 aggregation (A_norm @ h) + relu.
    # TODO(synk): F.dropout(training=True) randomness not reproduced; eval-mode identity.
    h = jnp.dot(a_ref[...], h.astype(jnp.bfloat16), preferred_element_type=jnp.float32)
    h = jnp.maximum(h, 0.0)
    # conv2 linear + aggregation
    h = jnp.dot(h.astype(jnp.bfloat16), w2_ref[...], preferred_element_type=jnp.float32)
    h = h + b2_ref[...]
    logits = jnp.dot(a_ref[...], h.astype(jnp.bfloat16), preferred_element_type=jnp.float32)
    # masked log-softmax over the real classes (lane padding ignored)
    lane = jax.lax.broadcasted_iota(jnp.int32, logits.shape, 1)
    z = jnp.where(lane < num_classes, logits, -1e30)
    m = jnp.max(z, axis=1, keepdims=True)
    s = z - m
    lse = jnp.log(jnp.sum(jnp.exp(s), axis=1, keepdims=True))
    o_ref[...] = s - lse


def _forward_fused(a_bf, x_bf, w1_bf, b1, w2_bf, b2, num_classes, vmem_limit):
    np_ = a_bf.shape[0]
    cp = w2_bf.shape[1]
    return pl.pallas_call(
        functools.partial(fused_gcn_kernel, num_classes=num_classes),
        out_shape=jax.ShapeDtypeStruct((np_, cp), jnp.float32),
        compiler_params=pltpu.CompilerParams(vmem_limit_bytes=vmem_limit),
    )(a_bf, x_bf, w1_bf, b1, w2_bf, b2)


# --------------------------------- row-tiled path -------------------------------------
def transform_kernel(x_ref, w_ref, b_ref, o_ref):
    # x @ W1 + b1 ; f32 accumulation, bf16 store (halves intermediate traffic).
    acc = jnp.dot(x_ref[...], w_ref[...], preferred_element_type=jnp.float32)
    o_ref[...] = (acc + b_ref[...]).astype(o_ref.dtype)


def agg_relu_linear_kernel(a_ref, h_ref, w_ref, b_ref, o_ref):
    # A@h1 (h already bf16, no per-step cast), relu, @W2 + b2, bf16 store.
    h1 = jnp.dot(a_ref[...], h_ref[...], preferred_element_type=jnp.float32)
    h1 = jnp.maximum(h1, 0.0)
    # TODO(synk): F.dropout(training=True) randomness not reproduced; eval-mode identity.
    h2 = jnp.dot(h1.astype(jnp.bfloat16), w_ref[...], preferred_element_type=jnp.float32)
    o_ref[...] = (h2 + b_ref[...]).astype(o_ref.dtype)


def agg_logsoftmax_kernel(a_ref, h_ref, o_ref, *, num_classes):
    logits = jnp.dot(a_ref[...], h_ref[...], preferred_element_type=jnp.float32)
    lane = jax.lax.broadcasted_iota(jnp.int32, logits.shape, 1)
    z = jnp.where(lane < num_classes, logits, -1e30)
    m = jnp.max(z, axis=1, keepdims=True)
    s = z - m
    lse = jnp.log(jnp.sum(jnp.exp(s), axis=1, keepdims=True))
    o_ref[...] = s - lse


def _forward_tiled(a_bf, x_bf, w1_bf, b1, w2_bf, b2, num_classes, tm, vmem_limit):
    np_, fp = x_bf.shape
    hp = w1_bf.shape[1]
    cp = w2_bf.shape[1]
    n_tiles = np_ // tm

    cparams = pltpu.CompilerParams(
        dimension_semantics=("parallel",),  # independent row tiles; v7x megacore split
        vmem_limit_bytes=vmem_limit)

    # conv1 linear: xw1 = x @ W1 + b1 (bf16 output)
    xw1 = pl.pallas_call(
        transform_kernel,
        out_shape=jax.ShapeDtypeStruct((np_, hp), jnp.bfloat16),
        grid=(n_tiles,),
        in_specs=[
            pl.BlockSpec((tm, fp), lambda i: (i, 0)),
            pl.BlockSpec((fp, hp), lambda i: (0, 0)),
            pl.BlockSpec((1, hp), lambda i: (0, 0)),
        ],
        out_specs=pl.BlockSpec((tm, hp), lambda i: (i, 0)),
        compiler_params=cparams,
    )(x_bf, w1_bf, b1)

    # conv1 aggregation + relu + conv2 linear (streams (tm, NP) row tiles of A)
    h2pre = pl.pallas_call(
        agg_relu_linear_kernel,
        out_shape=jax.ShapeDtypeStruct((np_, cp), jnp.bfloat16),
        grid=(n_tiles,),
        in_specs=[
            pl.BlockSpec((tm, np_), lambda i: (i, 0)),
            pl.BlockSpec((np_, hp), lambda i: (0, 0)),
            pl.BlockSpec((hp, cp), lambda i: (0, 0)),
            pl.BlockSpec((1, cp), lambda i: (0, 0)),
        ],
        out_specs=pl.BlockSpec((tm, cp), lambda i: (i, 0)),
        compiler_params=cparams,
    )(a_bf, xw1, w2_bf, b2)

    # conv2 aggregation + masked log_softmax (second stream over A)
    out = pl.pallas_call(
        functools.partial(agg_logsoftmax_kernel, num_classes=num_classes),
        out_shape=jax.ShapeDtypeStruct((np_, cp), jnp.float32),
        grid=(n_tiles,),
        in_specs=[
            pl.BlockSpec((tm, np_), lambda i: (i, 0)),
            pl.BlockSpec((np_, cp), lambda i: (0, 0)),
        ],
        out_specs=pl.BlockSpec((tm, cp), lambda i: (i, 0)),
        compiler_params=cparams,
    )(a_bf, h2pre)
    return out


# ---------------------------------- sizing helpers -------------------------------------
def _fused_vmem_bytes(np_, fp, hp, cp):
    """Whole-array residency estimate for the fused kernel (no pipelining)."""
    return (np_ * np_ * 2                         # A (bf16)
            + np_ * fp * 2                        # x (bf16)
            + fp * hp * 2 + hp * 4 + hp * cp * 2 + cp * 4   # weights / biases
            + np_ * cp * 4                        # output (f32)
            + np_ * hp * 6 + np_ * cp * 10)       # in-kernel intermediates (f32 + bf16)


def _tiled_step_vmem_bytes(tm, np_, fp, hp, cp):
    """Worst-case per-step footprint across the 3 tiled kernels (double-buffered blocks)."""
    k1 = 2 * tm * fp * 2 + 2 * fp * hp * 2 + 2 * hp * 4 + 2 * tm * hp * 2
    k2 = (2 * tm * np_ * 2 + 2 * np_ * hp * 2 + 2 * hp * cp * 2 + 2 * cp * 4
          + 2 * tm * cp * 2)
    k3 = 2 * tm * np_ * 2 + 2 * np_ * cp * 2 + 2 * tm * cp * 4
    return max(k1, k2, k3)


# Measured fraction of the HBM roofline achieved by mem-bound Pallas kernels vs tile size.
_TILE_EFFICIENCY = {1024: 0.86, 512: 0.85, 256: 0.63, 128: 0.29}


def _choose_row_tiling(n, fp, hp, cp, budget):
    """Pick (TM, NP) minimizing estimated A-stream time = NP^2 / efficiency(TM),
    penalizing odd tile counts (v7x: 2 TensorCores split the 'parallel' axis)."""
    best = None
    for tm, eff in _TILE_EFFICIENCY.items():
        np_ = _round_up(n, tm)
        if _tiled_step_vmem_bytes(tm, np_, fp, hp, cp) > int(budget * 0.85):
            continue
        n_tiles = np_ // tm
        balance = ((n_tiles + 1) // 2) / (n_tiles / 2.0)   # 2-core load imbalance factor
        cost = (float(np_) * np_ / eff) * balance
        if best is None or cost < best[0]:
            best = (cost, tm, np_)
    if best is None:
        return 128, _round_up(n, 128)
    return best[1], best[2]


# ------------------------------------- wrapper -----------------------------------------
def gcn_forward(a, x, w1, b1, w2, b2, num_classes, *, force_tiled=False):
    """Full GCNNetwork forward.

    a : (N, N) f32 dense normalized adjacency A[dst, src] (self-loops included)
    x : (N, F) f32 node features
    w1: (F, H), b1: (H,)   conv1.linear (weights stored as (in, out), i.e. W_pt.T)
    w2: (H, C), b2: (C,)   conv2.linear
    Returns (N, C) f32 log-probabilities.
    """
    n, f_in = x.shape
    hidden = w1.shape[1]
    c = w2.shape[1]
    assert c == num_classes

    fp = _round_up(f_in, LANE)
    hp = _round_up(hidden, LANE)
    cp = _round_up(c, LANE)
    budget = _vmem_budget_bytes()

    np_fused = _round_up(n, LANE)
    use_fused = (not force_tiled) and (
        _fused_vmem_bytes(np_fused, fp, hp, cp) <= int(budget * 0.7))
    if use_fused:
        np_ = np_fused
        tm = None
    else:
        tm, np_ = _choose_row_tiling(n, fp, hp, cp, budget)

    # Pad to lane-dense / row-tileable shapes; cast MXU operands to bf16 once here.
    a_bf = jnp.zeros((np_, np_), jnp.bfloat16).at[:n, :n].set(a.astype(jnp.bfloat16))
    x_bf = jnp.zeros((np_, fp), jnp.bfloat16).at[:n, :f_in].set(x.astype(jnp.bfloat16))
    w1_bf = jnp.zeros((fp, hp), jnp.bfloat16).at[:f_in, :hidden].set(w1.astype(jnp.bfloat16))
    b1_p = jnp.zeros((1, hp), jnp.float32).at[0, :hidden].set(b1)
    w2_bf = jnp.zeros((hp, cp), jnp.bfloat16).at[:hidden, :c].set(w2.astype(jnp.bfloat16))
    b2_p = jnp.zeros((1, cp), jnp.float32).at[0, :c].set(b2)

    if use_fused:
        out_p = _forward_fused(a_bf, x_bf, w1_bf, b1_p, w2_bf, b2_p, num_classes, budget)
    else:
        out_p = _forward_tiled(a_bf, x_bf, w1_bf, b1_p, w2_bf, b2_p, num_classes, tm, budget)
    return out_p[:n, :c]


def build_normalized_adjacency(edge_index, num_nodes):
    """add_self_loops + degree(row)^-0.5 normalization + scatter-add aggregation as a
    dense A_norm with A[dst, src] (deg over edge_index[0], exactly as the module)."""
    self_loops = jnp.stack([jnp.arange(num_nodes, dtype=edge_index.dtype)] * 2)
    ei = jnp.concatenate([edge_index, self_loops], axis=1)
    row, col = ei[0], ei[1]                       # row = source (x_j), col = target
    deg = jnp.zeros((num_nodes,), jnp.float32).at[row].add(1.0)
    deg_inv_sqrt = deg ** -0.5
    norm = deg_inv_sqrt[row] * deg_inv_sqrt[col]
    a = jnp.zeros((num_nodes, num_nodes), jnp.float32).at[col, row].add(norm)
    return a


def reference_forward(a, x, w1, b1, w2, b2):
    """f32 reference mirroring the kernels' bf16 quantization points (tight tolerance)."""
    bf = lambda t: t.astype(jnp.bfloat16).astype(jnp.float32)
    a_q, x_q, w1_q, w2_q = bf(a), bf(x), bf(w1), bf(w2)
    h = bf(x_q @ w1_q + b1)                 # conv1 linear (fed to aggregation as bf16)
    h = bf(jnp.maximum(a_q @ h, 0.0))       # aggregate + relu (dropout = identity)
    h = bf(h @ w2_q + b2)                   # conv2 linear
    return jax.nn.log_softmax(a_q @ h, axis=1)


def _make_problem(key, n, f_in, hidden, c, e):
    k_x, k_e1, k_e2, k_w1, k_b1, k_w2, k_b2 = jax.random.split(key, 7)
    x = jax.random.normal(k_x, (n, f_in), dtype=jnp.float32)
    src = jax.random.randint(k_e1, (e,), 0, n, dtype=jnp.int32)
    dst = jax.random.randint(k_e2, (e,), 0, n, dtype=jnp.int32)
    edge_index = jnp.stack([src, dst])
    lim1 = 1.0 / (f_in ** 0.5)
    w1 = jax.random.uniform(k_w1, (f_in, hidden), jnp.float32, -lim1, lim1)
    b1 = jax.random.uniform(k_b1, (hidden,), jnp.float32, -lim1, lim1)
    lim2 = 1.0 / (hidden ** 0.5)
    w2 = jax.random.uniform(k_w2, (hidden, c), jnp.float32, -lim2, lim2)
    b2 = jax.random.uniform(k_b2, (c,), jnp.float32, -lim2, lim2)
    a = build_normalized_adjacency(edge_index, n)
    return a, x, w1, b1, w2, b2


if __name__ == "__main__":
    key = jax.random.PRNGKey(0)
    k1, k2 = jax.random.split(key)

    # ---- test 1: small "Cora-like" graph -> fused single-kernel path ----
    N1, F1, H1, C1, E1 = 128, 128, 16, 8, 512
    a1, x1, w11, b11, w21, b21 = _make_problem(k1, N1, F1, H1, C1, E1)
    fwd1 = jax.jit(functools.partial(gcn_forward, num_classes=C1))
    out1 = fwd1(a1, x1, w11, b11, w21, b21)
    jax.block_until_ready(out1)
    ref1 = reference_forward(a1, x1, w11, b11, w21, b21)
    assert out1.shape == (N1, C1) and out1.dtype == jnp.float32
    err1 = float(jnp.max(jnp.abs(out1 - ref1)))
    assert err1 < 2e-2, f"fused path: max abs error vs reference: {err1}"

    # ---- test 2: slightly larger graph, force the row-tiled multi-kernel path ----
    N2, F2, H2, C2, E2 = 384, 96, 16, 10, 1536
    a2, x2, w12, b12, w22, b22 = _make_problem(k2, N2, F2, H2, C2, E2)
    fwd2 = jax.jit(functools.partial(gcn_forward, num_classes=C2, force_tiled=True))
    out2 = fwd2(a2, x2, w12, b12, w22, b22)
    jax.block_until_ready(out2)
    ref2 = reference_forward(a2, x2, w12, b12, w22, b22)
    assert out2.shape == (N2, C2) and out2.dtype == jnp.float32
    err2 = float(jnp.max(jnp.abs(out2 - ref2)))
    assert err2 < 2e-2, f"tiled path: max abs error vs reference: {err2}"

    print("KERNEL_OK")
</pallas_src>

<mosaic_0001>
module attributes {stable_mosaic.version = 11 : i64} {
  func.func @fused_gcn_kernel(%arg0: memref<128x128xbf16, #tpu.memory_space<vmem>>, %arg1: memref<128x128xbf16, #tpu.memory_space<vmem>>, %arg2: memref<128x128xbf16, #tpu.memory_space<vmem>>, %arg3: memref<1x128xf32, #tpu.memory_space<vmem>>, %arg4: memref<128x128xbf16, #tpu.memory_space<vmem>>, %arg5: memref<1x128xf32, #tpu.memory_space<vmem>>, %arg6: memref<128x128xf32, #tpu.memory_space<vmem>>) attributes {dimension_semantics = [], scalar_prefetch = 0 : i64, scratch_operands = 0 : i64, tpu.core_type = #tpu.core_type<tc>} {
    %c0 = arith.constant 0 : index
    %c0_0 = arith.constant 0 : index
    %0 = vector.load %arg1[%c0, %c0_0] : memref<128x128xbf16, #tpu.memory_space<vmem>>, vector<128x128xbf16>
    %c0_1 = arith.constant 0 : index
    %c0_2 = arith.constant 0 : index
    %1 = vector.load %arg2[%c0_1, %c0_2] : memref<128x128xbf16, #tpu.memory_space<vmem>>, vector<128x128xbf16>
    %cst = arith.constant dense<0.000000e+00> : vector<128x128xf32>
    %2 = tpu.matmul %0, %1, %cst {dimension_numbers = #tpu.dot_dimension_numbers<[1], [0], [0], [1], [0, 0, 1, 1], [], []>} : vector<128x128xbf16>, vector<128x128xbf16>, vector<128x128xf32> -> vector<128x128xf32>
    %c0_3 = arith.constant 0 : index
    %c0_4 = arith.constant 0 : index
    %3 = vector.load %arg3[%c0_3, %c0_4] : memref<1x128xf32, #tpu.memory_space<vmem>>, vector<1x128xf32>
    %4 = vector.broadcast %3 : vector<1x128xf32> to vector<128x128xf32>
    %5 = arith.addf %2, %4 : vector<128x128xf32>
    %c0_5 = arith.constant 0 : index
    %c0_6 = arith.constant 0 : index
    %6 = vector.load %arg0[%c0_5, %c0_6] : memref<128x128xbf16, #tpu.memory_space<vmem>>, vector<128x128xbf16>
    %7 = arith.truncf %5 : vector<128x128xf32> to vector<128x128xbf16>
    %cst_7 = arith.constant dense<0.000000e+00> : vector<128x128xf32>
    %8 = tpu.matmul %6, %7, %cst_7 {dimension_numbers = #tpu.dot_dimension_numbers<[1], [0], [0], [1], [0, 0, 1, 1], [], []>} : vector<128x128xbf16>, vector<128x128xbf16>, vector<128x128xf32> -> vector<128x128xf32>
    %cst_8 = arith.constant 0.000000e+00 : f32
    %9 = vector.broadcast %cst_8 : f32 to vector<128x128xf32>
    %10 = arith.maximumf %8, %9 : vector<128x128xf32>
    %11 = arith.truncf %10 : vector<128x128xf32> to vector<128x128xbf16>
    %c0_9 = arith.constant 0 : index
    %c0_10 = arith.constant 0 : index
    %12 = vector.load %arg4[%c0_9, %c0_10] : memref<128x128xbf16, #tpu.memory_space<vmem>>, vector<128x128xbf16>
    %cst_11 = arith.constant dense<0.000000e+00> : vector<128x128xf32>
    %13 = tpu.matmul %11, %12, %cst_11 {dimension_numbers = #tpu.dot_dimension_numbers<[1], [0], [0], [1], [0, 0, 1, 1], [], []>} : vector<128x128xbf16>, vector<128x128xbf16>, vector<128x128xf32> -> vector<128x128xf32>
    %c0_12 = arith.constant 0 : index
    %c0_13 = arith.constant 0 : index
    %14 = vector.load %arg5[%c0_12, %c0_13] : memref<1x128xf32, #tpu.memory_space<vmem>>, vector<1x128xf32>
    %15 = vector.broadcast %14 : vector<1x128xf32> to vector<128x128xf32>
    %16 = arith.addf %13, %15 : vector<128x128xf32>
    %c0_14 = arith.constant 0 : index
    %c0_15 = arith.constant 0 : index
    %17 = vector.load %arg0[%c0_14, %c0_15] : memref<128x128xbf16, #tpu.memory_space<vmem>>, vector<128x128xbf16>
    %18 = arith.truncf %16 : vector<128x128xf32> to vector<128x128xbf16>
    %cst_16 = arith.constant dense<0.000000e+00> : vector<128x128xf32>
    %19 = tpu.matmul %17, %18, %cst_16 {dimension_numbers = #tpu.dot_dimension_numbers<[1], [0], [0], [1], [0, 0, 1, 1], [], []>} : vector<128x128xbf16>, vector<128x128xbf16>, vector<128x128xf32> -> vector<128x128xf32>
    %20 = tpu.iota {dimensions = array<i32: 1>} : vector<128x128xi32>
    %c8_i32 = arith.constant 8 : i32
    %21 = vector.broadcast %c8_i32 : i32 to vector<128x128xi32>
    %22 = arith.cmpi slt, %20, %21 : vector<128x128xi32>
    %cst_17 = arith.constant -1.000000e+30 : f32
    %23 = vector.broadcast %cst_17 : f32 to vector<128x128xf32>
    %24 = arith.select %22, %19, %23 : vector<128x128xi1>, vector<128x128xf32>
    %cst_18 = arith.constant dense<0xFF800000> : vector<128xf32>
    %25 = vector.multi_reduction <maximumf>, %24, %cst_18 [1] : vector<128x128xf32> to vector<128xf32>
    %26 = vector.shape_cast %25 : vector<128xf32> to vector<128x1xf32>
    %27 = vector.broadcast %26 : vector<128x1xf32> to vector<128x128xf32>
    %28 = arith.subf %24, %27 : vector<128x128xf32>
    %29 = math.exp %28 : vector<128x128xf32>
    %cst_19 = arith.constant dense<0.000000e+00> : vector<128xf32>
    %30 = vector.multi_reduction <add>, %29, %cst_19 [1] : vector<128x128xf32> to vector<128xf32>
    %31 = vector.shape_cast %30 : vector<128xf32> to vector<128x1xf32>
    %32 = math.log %31 : vector<128x1xf32>
    %33 = vector.broadcast %32 : vector<128x1xf32> to vector<128x128xf32>
    %34 = arith.subf %28, %33 : vector<128x128xf32>
    %c0_20 = arith.constant 0 : index
    %c0_21 = arith.constant 0 : index
    %35 = vector.load %arg6[%c0_20, %c0_21] : memref<128x128xf32, #tpu.memory_space<vmem>>, vector<128x128xf32>
    tpu.vector_store %arg6[%c0_20, %c0_21], %34 {strides = array<i32>} : memref<128x128xf32, #tpu.memory_space<vmem>>, vector<128x128xf32>,
    return
  }
}

</mosaic_0001>

<llo_original>
// kernel: gcn_forward.1
$region0: #{gcn_forward.1}
  #allocation0 [shape = 'u32[]', space=smem, size = 0x4, offset = 0x4, fixed_abs, tag = 'smem constant byte address 0x4 - core index']
  #allocation1 [shape = 'u32[144,128]{1,0:T(1,128)}', space=vmem, size = 0x12000, scoped, tag = 'internal scratch']
  %s0 = inlined_call_operand.vmem [shape: bf16[128,128], index: 0, kind: input, shape index: {}]
  %s1 = inlined_call_operand.vmem [shape: bf16[128,128], index: 1, kind: input, shape index: {}]
  %s2 = inlined_call_operand.vmem [shape: bf16[128,128], index: 2, kind: input, shape index: {}]
  %s3 = inlined_call_operand.vmem [shape: f32[1,128], index: 3, kind: input, shape index: {}]
  %s4 = inlined_call_operand.vmem [shape: bf16[128,128], index: 4, kind: input, shape index: {}]
  %s5 = inlined_call_operand.vmem [shape: f32[1,128], index: 5, kind: input, shape index: {}]
  %s6 = inlined_call_operand.vmem [shape: f32[128,128], index: 6, kind: output, shape index: {}]
  %s7 = sld [smem:[#allocation0]]
  $region34: #{gcn_forward.1} parent=0
    _
  %s9 = ssub.s32 1, %s7
  %s10 = scalar_select 0, %s9, %s7
  // Predicated region
  $region2: #{gcn_forward.1} parent=0 // pred_check
    _
  $region3: #{gcn_forward.1} parent=0 // pred_check_branch
    %12 = sbr.rel (0) target = $region5
  $region4: #{gcn_forward.1} parent=0 // pred_region
    _
  $region5: #{gcn_forward.1} parent=0 // pred_fallthru
    _
  // Predicated region
  $region6: #{gcn_forward.1} parent=0 // pred_check
    _
  $region7: #{gcn_forward.1} parent=0 // pred_check_branch
    %14 = sbr.rel (0) target = $region9
  $region8: #{gcn_forward.1} parent=0 // pred_region
    _
  $region9: #{gcn_forward.1} parent=0 // pred_fallthru
    _
  // Predicated region
  $region10: #{gcn_forward.1} parent=0 // pred_check
    _
  $region11: #{gcn_forward.1} parent=0 // pred_check_branch
    %16 = sbr.rel (0) target = $region13
  $region12: #{gcn_forward.1} parent=0 // pred_region
    _
  $region13: #{gcn_forward.1} parent=0 // pred_fallthru
    _
  // Predicated region
  $region14: #{gcn_forward.1} parent=0 // pred_check
    _
  $region15: #{gcn_forward.1} parent=0 // pred_check_branch
    %18 = sbr.rel (0) target = $region17
  $region16: #{gcn_forward.1} parent=0 // pred_region
    _
  $region17: #{gcn_forward.1} parent=0 // pred_fallthru
    _
  // Predicated region
  $region18: #{gcn_forward.1} parent=0 // pred_check
    _
  $region19: #{gcn_forward.1} parent=0 // pred_check_branch
    %20 = sbr.rel (0) target = $region21
  $region20: #{gcn_forward.1} parent=0 // pred_region
    _
  $region21: #{gcn_forward.1} parent=0 // pred_fallthru
    _
  // Predicated region
  $region22: #{gcn_forward.1} parent=0 // pred_check
    _
  $region23: #{gcn_forward.1} parent=0 // pred_check_branch
    %22 = sbr.rel (0) target = $region25
  $region24: #{gcn_forward.1} parent=0 // pred_region
    _
  $region25: #{gcn_forward.1} parent=0 // pred_fallthru
    _
  %v24 = vld [vmem:[%s1] sm:$0xf]
  %v25 = vld [vmem:[%s1 + $0x4] sm:$0xf]
  %v26 = vld [vmem:[%s1 + $0x8] sm:$0xf]
  %v27 = vld [vmem:[%s1 + $0xc] sm:$0xf]
  %v28 = vld [vmem:[%s1 + $0x10] sm:$0xf]
  %v29 = vld [vmem:[%s1 + $0x14] sm:$0xf]
  %v30 = vld [vmem:[%s1 + $0x18] sm:$0xf]
  %v31 = vld [vmem:[%s1 + $0x1c] sm:$0xf]
  %v32 = vld [vmem:[%s1 + $0x20] sm:$0xf]
  %v33 = vld [vmem:[%s1 + $0x24] sm:$0xf]
  %v34 = vld [vmem:[%s1 + $0x28] sm:$0xf]
  %v35 = vld [vmem:[%s1 + $0x2c] sm:$0xf]
  %v36 = vld [vmem:[%s1 + $0x30] sm:$0xf]
  %v37 = vld [vmem:[%s1 + $0x34] sm:$0xf]
  %v38 = vld [vmem:[%s1 + $0x38] sm:$0xf]
  %v39 = vld [vmem:[%s1 + $0x3c] sm:$0xf]
  %v40 = vld [vmem:[%s2] sm:$0xf]
  %v41 = vld [vmem:[%s2 + $0x4] sm:$0xf]
  %v42 = vld [vmem:[%s2 + $0x8] sm:$0xf]
  %v43 = vld [vmem:[%s2 + $0xc] sm:$0xf]
  %v44 = vld [vmem:[%s2 + $0x10] sm:$0xf]
  %v45 = vld [vmem:[%s2 + $0x14] sm:$0xf]
  %v46 = vld [vmem:[%s2 + $0x18] sm:$0xf]
  %v47 = vld [vmem:[%s2 + $0x1c] sm:$0xf]
  %v48 = vld [vmem:[%s2 + $0x20] sm:$0xf]
  %v49 = vld [vmem:[%s2 + $0x24] sm:$0xf]
  %v50 = vld [vmem:[%s2 + $0x28] sm:$0xf]
  %v51 = vld [vmem:[%s2 + $0x2c] sm:$0xf]
  %v52 = vld [vmem:[%s2 + $0x30] sm:$0xf]
  %v53 = vld [vmem:[%s2 + $0x34] sm:$0xf]
  %v54 = vld [vmem:[%s2 + $0x38] sm:$0xf]
  %v55 = vld [vmem:[%s2 + $0x3c] sm:$0xf]
  %v56 = vld [vmem:[%s3] sm:$0x1]
  %v58 = vlaneseq
  %v59 = vshrl.u32 %v58, 7
  %v60 = vsub.s32 0, %v59
  %v61 = vrot.slane %v56, %v60
  %v79 = vunpack.c.l.b16 %v24
  %v80 = vunpack.c.l.b16 %v25
  %v81 = vunpack.c.l.b16 %v26
  %v82 = vunpack.c.l.b16 %v27
  %v83 = vunpack.c.l.b16 %v28
  %v84 = vunpack.c.l.b16 %v29
  %v85 = vunpack.c.l.b16 %v30
  %v86 = vunpack.c.l.b16 %v31
  %v87 = vunpack.c.l.b16 %v32
  %v88 = vunpack.c.l.b16 %v33
  %v89 = vunpack.c.l.b16 %v34
  %v90 = vunpack.c.l.b16 %v35
  %v91 = vunpack.c.l.b16 %v36
  %v92 = vunpack.c.l.b16 %v37
  %v93 = vunpack.c.l.b16 %v38
  %v94 = vunpack.c.l.b16 %v39
  %v95 = vpack.c.b16 %v80, %v79
  %v96 = vpack.c.b16 %v82, %v81
  %v97 = vpack.c.b16 %v84, %v83
  %v98 = vpack.c.b16 %v86, %v85
  %v99 = vpack.c.b16 %v88, %v87
  %v100 = vpack.c.b16 %v90, %v89
  %v101 = vpack.c.b16 %v92, %v91
  %v102 = vpack.c.b16 %v94, %v93
  %v127 = vunpack.c.l.b16 %v40
  %v128 = vunpack.c.l.b16 %v41
  %v129 = vunpack.c.l.b16 %v42
  %v130 = vunpack.c.l.b16 %v43
  %v131 = vunpack.c.l.b16 %v44
  %v132 = vunpack.c.l.b16 %v45
  %v133 = vunpack.c.l.b16 %v46
  %v134 = vunpack.c.l.b16 %v47
  %v135 = vunpack.c.l.b16 %v48
  %v136 = vunpack.c.l.b16 %v49
  %v137 = vunpack.c.l.b16 %v50
  %v138 = vunpack.c.l.b16 %v51
  %v139 = vunpack.c.l.b16 %v52
  %v140 = vunpack.c.l.b16 %v53
  %v141 = vunpack.c.l.b16 %v54
  %v142 = vunpack.c.l.b16 %v55
  %v143 = vpack.c.b16 %v128, %v127
  %v144 = vpack.c.b16 %v130, %v129
  %v145 = vpack.c.b16 %v132, %v131
  %v146 = vpack.c.b16 %v134, %v133
  %v147 = vpack.c.b16 %v136, %v135
  %v148 = vpack.c.b16 %v138, %v137
  %v149 = vpack.c.b16 %v140, %v139
  %v150 = vpack.c.b16 %v142, %v141
  %159 = vmatprep.subr.bf16.mxu0 0
  %160 = vmatpush1.bf16.msra.mxu0 %v143
  %161 = vmatprep.subr.bf16.mxu0 0
  %162 = vmatpush1.bf16.msra.mxu0 %v144
  %163 = vmatprep.subr.bf16.mxu0 0
  %164 = vmatpush1.bf16.msra.mxu0 %v145
  %165 = vmatprep.subr.bf16.mxu0 0
  %166 = vmatpush1.bf16.msra.mxu0 %v146
  %167 = vmatprep.subr.bf16.mxu0 0
  %168 = vmatpush1.bf16.msra.mxu0 %v147
  %169 = vmatprep.subr.bf16.mxu0 0
  %170 = vmatpush1.bf16.msra.mxu0 %v148
  %171 = vmatprep.subr.bf16.mxu0 0
  %172 = vmatpush1.bf16.msra.mxu0 %v149
  %173 = vmatprep.subr.bf16.mxu0 0
  %174 = vmatpush1.bf16.msra.mxu0 %v150
  %175 = vmatprep.subr.bf16.mxu0 0
  %176 = vmatpush1.bf16.msra.mxu0 0
  %177 = vmatprep.subr.bf16.mxu0 0
  %178 = vmatpush1.bf16.msra.mxu0 0
  %179 = vmatprep.subr.bf16.mxu0 0
  %180 = vmatpush1.bf16.msra.mxu0 0
  %181 = vmatprep.subr.bf16.mxu0 0
  %182 = vmatpush1.bf16.msra.mxu0 0
  %183 = vmatprep.subr.bf16.mxu0 0
  %184 = vmatpush1.bf16.msra.mxu0 0
  %185 = vmatprep.subr.bf16.mxu0 0
  %186 = vmatpush1.bf16.msra.mxu0 0
  %187 = vmatprep.subr.bf16.mxu0 0
  %188 = vmatpush1.bf16.msra.mxu0 0
  %189 = vmatprep.subr.bf16.mxu0 0
  %190 = vmatpush1.bf16.msra.mxu0 0
  %191 = vmatprep.mubr.bf16.mxu0 0
  %192 = vmatmul.mubr.bf16.gmra.mrb[0].mxu0 %v95
  %v193 = vpop.f32.mrb[0].mxu0
  %v194 = vadd.f32 %v61, %v193
  %v195 = vpop.f32.mrb[0].mxu0
  %v196 = vpop.f32.mrb[0].mxu0
  %v197 = vadd.f32 %v61, %v196
  %v198 = vpop.f32.mrb[0].mxu0
  %199 = vmatprep.mubr.bf16.mxu0 0
  %200 = vmatmul.mubr.bf16.gmra.mrb[0].mxu0 %v96
  %v201 = vpop.f32.mrb[0].mxu0
  %v202 = vadd.f32 %v61, %v201
  %v203 = vpop.f32.mrb[0].mxu0
  %v204 = vpop.f32.mrb[0].mxu0
  %v205 = vadd.f32 %v61, %v204
  %v206 = vpop.f32.mrb[0].mxu0
  %207 = vmatprep.mubr.bf16.mxu0 0
  %208 = vmatmul.mubr.bf16.gmra.mrb[0].mxu0 %v97
  %v209 = vpop.f32.mrb[0].mxu0
  %v210 = vadd.f32 %v61, %v209
  %v211 = vpop.f32.mrb[0].mxu0
  %v212 = vpop.f32.mrb[0].mxu0
  %v213 = vadd.f32 %v61, %v212
  %v214 = vpop.f32.mrb[0].mxu0
  %215 = vmatprep.mubr.bf16.mxu0 0
  %216 = vmatmul.mubr.bf16.gmra.mrb[0].mxu0 %v98
  %v217 = vpop.f32.mrb[0].mxu0
  %v218 = vadd.f32 %v61, %v217
  %v219 = vpop.f32.mrb[0].mxu0
  %v220 = vpop.f32.mrb[0].mxu0
  %v221 = vadd.f32 %v61, %v220
  %v222 = vpop.f32.mrb[0].mxu0
  %223 = vmatprep.mubr.bf16.mxu0 0
  %224 = vmatmul.mubr.bf16.gmra.mrb[0].mxu0 %v99
  %v225 = vpop.f32.mrb[0].mxu0
  %v226 = vadd.f32 %v61, %v225
  %v227 = vpop.f32.mrb[0].mxu0
  %v228 = vpop.f32.mrb[0].mxu0
  %v229 = vadd.f32 %v61, %v228
  %v230 = vpop.f32.mrb[0].mxu0
  %231 = vmatprep.mubr.bf16.mxu0 0
  %232 = vmatmul.mubr.bf16.gmra.mrb[0].mxu0 %v100
  %v233 = vpop.f32.mrb[0].mxu0
  %v234 = vadd.f32 %v61, %v233
  %v235 = vpop.f32.mrb[0].mxu0
  %v236 = vpop.f32.mrb[0].mxu0
  %v237 = vadd.f32 %v61, %v236
  %v238 = vpop.f32.mrb[0].mxu0
  %239 = vmatprep.mubr.bf16.mxu0 0
  %240 = vmatmul.mubr.bf16.gmra.mrb[0].mxu0 %v101
  %v241 = vpop.f32.mrb[0].mxu0
  %v242 = vadd.f32 %v61, %v241
  %v243 = vpop.f32.mrb[0].mxu0
  %v244 = vpop.f32.mrb[0].mxu0
  %v245 = vadd.f32 %v61, %v244
  %v246 = vpop.f32.mrb[0].mxu0
  %247 = vmatprep.mubr.bf16.mxu0 0
  %248 = vmatmul.mubr.bf16.gmra.mrb[0].mxu0 %v102
  %v249 = vpop.f32.mrb[0].mxu0
  %v250 = vadd.f32 %v61, %v249
  %v251 = vpop.f32.mrb[0].mxu0
  %v252 = vpop.f32.mrb[0].mxu0
  %v253 = vadd.f32 %v61, %v252
  %v254 = vpop.f32.mrb[0].mxu0
  %255 = vdwg.mxu0
  %v256 = vld [vmem:[%s0] sm:$0xf]
  %v257 = vld [vmem:[%s0 + $0x4] sm:$0xf]
  %v258 = vld [vmem:[%s0 + $0x8] sm:$0xf]
  %v259 = vld [vmem:[%s0 + $0xc] sm:$0xf]
  %v260 = vld [vmem:[%s0 + $0x10] sm:$0xf]
  %v261 = vld [vmem:[%s0 + $0x14] sm:$0xf]
  %v262 = vld [vmem:[%s0 + $0x18] sm:$0xf]
  %v263 = vld [vmem:[%s0 + $0x1c] sm:$0xf]
  %v264 = vld [vmem:[%s0 + $0x20] sm:$0xf]
  %v265 = vld [vmem:[%s0 + $0x24] sm:$0xf]
  %v266 = vld [vmem:[%s0 + $0x28] sm:$0xf]
  %v267 = vld [vmem:[%s0 + $0x2c] sm:$0xf]
  %v268 = vld [vmem:[%s0 + $0x30] sm:$0xf]
  %v269 = vld [vmem:[%s0 + $0x34] sm:$0xf]
  %v270 = vld [vmem:[%s0 + $0x38] sm:$0xf]
  %v271 = vld [vmem:[%s0 + $0x3c] sm:$0xf]
  %v272 = vpack.c.bf16 %v197, %v194
  %v273 = vpack.c.bf16 %v205, %v202
  %v274 = vpack.c.bf16 %v213, %v210
  %v275 = vpack.c.bf16 %v221, %v218
  %v276 = vpack.c.bf16 %v229, %v226
  %v277 = vpack.c.bf16 %v237, %v234
  %v278 = vpack.c.bf16 %v245, %v242
  %v279 = vpack.c.bf16 %v253, %v250
  %v296 = vunpack.c.l.b16 %v256
  %v297 = vunpack.c.l.b16 %v257
  %v298 = vunpack.c.l.b16 %v258
  %v299 = vunpack.c.l.b16 %v259
  %v300 = vunpack.c.l.b16 %v260
  %v301 = vunpack.c.l.b16 %v261
  %v302 = vunpack.c.l.b16 %v262
  %v303 = vunpack.c.l.b16 %v263
  %v304 = vunpack.c.l.b16 %v264
  %v305 = vunpack.c.l.b16 %v265
  %v306 = vunpack.c.l.b16 %v266
  %v307 = vunpack.c.l.b16 %v267
  %v308 = vunpack.c.l.b16 %v268
  %v309 = vunpack.c.l.b16 %v269
  %v310 = vunpack.c.l.b16 %v270
  %v311 = vunpack.c.l.b16 %v271
  %v312 = vpack.c.b16 %v297, %v296
  %v313 = vpack.c.b16 %v299, %v298
  %v314 = vpack.c.b16 %v301, %v300
  %v315 = vpack.c.b16 %v303, %v302
  %v316 = vpack.c.b16 %v305, %v304
  %v317 = vpack.c.b16 %v307, %v306
  %v318 = vpack.c.b16 %v309, %v308
  %v319 = vpack.c.b16 %v311, %v310
  %328 = vmatprep.subr.bf16.mxu0 0
  %329 = vmatpush1.bf16.msra.mxu0 %v272
  %330 = vmatprep.subr.bf16.mxu0 0
  %331 = vmatpush1.bf16.msra.mxu0 %v273
  %332 = vmatprep.subr.bf16.mxu0 0
  %333 = vmatpush1.bf16.msra.mxu0 %v274
  %334 = vmatprep.subr.bf16.mxu0 0
  %335 = vmatpush1.bf16.msra.mxu0 %v275
  %336 = vmatprep.subr.bf16.mxu0 0
  %337 = vmatpush1.bf16.msra.mxu0 %v276
  %338 = vmatprep.subr.bf16.mxu0 0
  %339 = vmatpush1.bf16.msra.mxu0 %v277
  %340 = vmatprep.subr.bf16.mxu0 0
  %341 = vmatpush1.bf16.msra.mxu0 %v278
  %342 = vmatprep.subr.bf16.mxu0 0
  %343 = vmatpush1.bf16.msra.mxu0 %v279
  %344 = vmatprep.subr.bf16.mxu0 0
  %345 = vmatpush1.bf16.msra.mxu0 0
  %346 = vmatprep.subr.bf16.mxu0 0
  %347 = vmatpush1.bf16.msra.mxu0 0
  %348 = vmatprep.subr.bf16.mxu0 0
  %349 = vmatpush1.bf16.msra.mxu0 0
  %350 = vmatprep.subr.bf16.mxu0 0
  %351 = vmatpush1.bf16.msra.mxu0 0
  %352 = vmatprep.subr.bf16.mxu0 0
  %353 = vmatpush1.bf16.msra.mxu0 0
  %354 = vmatprep.subr.bf16.mxu0 0
  %355 = vmatpush1.bf16.msra.mxu0 0
  %356 = vmatprep.subr.bf16.mxu0 0
  %357 = vmatpush1.bf16.msra.mxu0 0
  %358 = vmatprep.subr.bf16.mxu0 0
  %359 = vmatpush1.bf16.msra.mxu0 0
  %360 = vmatprep.mubr.bf16.mxu0 0
  %361 = vmatmul.mubr.bf16.gmra.mrb[0].mxu0 %v312
  %v362 = vpop.f32.mrb[0].mxu0
  %v363 = vadd.f32 0.0, %v362
  %v364 = vpop.f32.mrb[0].mxu0
  %v365 = vpop.f32.mrb[0].mxu0
  %v366 = vadd.f32 0.0, %v365
  %v367 = vpop.f32.mrb[0].mxu0
  %368 = vmatprep.mubr.bf16.mxu0 0
  %369 = vmatmul.mubr.bf16.gmra.mrb[0].mxu0 %v313
  %v370 = vpop.f32.mrb[0].mxu0
  %v371 = vadd.f32 0.0, %v370
  %v372 = vpop.f32.mrb[0].mxu0
  %v373 = vpop.f32.mrb[0].mxu0
  %v374 = vadd.f32 0.0, %v373
  %v375 = vpop.f32.mrb[0].mxu0
  %376 = vmatprep.mubr.bf16.mxu0 0
  %377 = vmatmul.mubr.bf16.gmra.mrb[0].mxu0 %v314
  %v378 = vpop.f32.mrb[0].mxu0
  %v379 = vadd.f32 0.0, %v378
  %v380 = vpop.f32.mrb[0].mxu0
  %v381 = vpop.f32.mrb[0].mxu0
  %v382 = vadd.f32 0.0, %v381
  %v383 = vpop.f32.mrb[0].mxu0
  %384 = vmatprep.mubr.bf16.mxu0 0
  %385 = vmatmul.mubr.bf16.gmra.mrb[0].mxu0 %v315
  %v386 = vpop.f32.mrb[0].mxu0
  %v387 = vadd.f32 0.0, %v386
  %v388 = vpop.f32.mrb[0].mxu0
  %v389 = vpop.f32.mrb[0].mxu0
  %v390 = vadd.f32 0.0, %v389
  %v391 = vpop.f32.mrb[0].mxu0
  %392 = vmatprep.mubr.bf16.mxu0 0
  %393 = vmatmul.mubr.bf16.gmra.mrb[0].mxu0 %v316
  %v394 = vpop.f32.mrb[0].mxu0
  %v395 = vadd.f32 0.0, %v394
  %v396 = vpop.f32.mrb[0].mxu0
  %v397 = vpop.f32.mrb[0].mxu0
  %v398 = vadd.f32 0.0, %v397
  %v399 = vpop.f32.mrb[0].mxu0
  %400 = vmatprep.mubr.bf16.mxu0 0
  %401 = vmatmul.mubr.bf16.gmra.mrb[0].mxu0 %v317
  %v402 = vpop.f32.mrb[0].mxu0
  %v403 = vadd.f32 0.0, %v402
  %v404 = vpop.f32.mrb[0].mxu0
  %v405 = vpop.f32.mrb[0].mxu0
  %v406 = vadd.f32 0.0, %v405
  %v407 = vpop.f32.mrb[0].mxu0
  %408 = vmatprep.mubr.bf16.mxu0 0
  %409 = vmatmul.mubr.bf16.gmra.mrb[0].mxu0 %v318
  %v410 = vpop.f32.mrb[0].mxu0
  %v411 = vadd.f32 0.0, %v410
  %v412 = vpop.f32.mrb[0].mxu0
  %v413 = vpop.f32.mrb[0].mxu0
  %v414 = vadd.f32 0.0, %v413
  %v415 = vpop.f32.mrb[0].mxu0
  %416 = vmatprep.mubr.bf16.mxu0 0
  %417 = vmatmul.mubr.bf16.gmra.mrb[0].mxu0 %v319
  %v418 = vpop.f32.mrb[0].mxu0
  %v419 = vadd.f32 0.0, %v418
  %v420 = vpop.f32.mrb[0].mxu0
  %v421 = vpop.f32.mrb[0].mxu0
  %v422 = vadd.f32 0.0, %v421
  %v423 = vpop.f32.mrb[0].mxu0
  %424 = vdwg.mxu0
  %v425 = vmax.f32 %v363, 0.0
  %v426 = vmax.f32 %v366, 0.0
  %v427 = vmax.f32 %v371, 0.0
  %v428 = vmax.f32 %v374, 0.0
  %v429 = vmax.f32 %v379, 0.0
  %v430 = vmax.f32 %v382, 0.0
  %v431 = vmax.f32 %v387, 0.0
  %v432 = vmax.f32 %v390, 0.0
  %v433 = vmax.f32 %v395, 0.0
  %v434 = vmax.f32 %v398, 0.0
  %v435 = vmax.f32 %v403, 0.0
  %v436 = vmax.f32 %v406, 0.0
  %v437 = vmax.f32 %v411, 0.0
  %v438 = vmax.f32 %v414, 0.0
  %v439 = vmax.f32 %v419, 0.0
  %v440 = vmax.f32 %v422, 0.0
  %v441 = vpack.c.bf16 %v426, %v425
  %v442 = vpack.c.bf16 %v428, %v427
  %v443 = vpack.c.bf16 %v430, %v429
  %v444 = vpack.c.bf16 %v432, %v431
  %v445 = vpack.c.bf16 %v434, %v433
  %v446 = vpack.c.bf16 %v436, %v435
  %v447 = vpack.c.bf16 %v438, %v437
  %v448 = vpack.c.bf16 %v440, %v439
  %v449 = vld [vmem:[%s4] sm:$0xf]
  %v450 = vld [vmem:[%s4 + $0x4] sm:$0xf]
  %v451 = vld [vmem:[%s4 + $0x8] sm:$0xf]
  %v452 = vld [vmem:[%s4 + $0xc] sm:$0xf]
  %v453 = vld [vmem:[%s4 + $0x10] sm:$0xf]
  %v454 = vld [vmem:[%s4 + $0x14] sm:$0xf]
  %v455 = vld [vmem:[%s4 + $0x18] sm:$0xf]
  %v456 = vld [vmem:[%s4 + $0x1c] sm:$0xf]
  %v457 = vld [vmem:[%s4 + $0x20] sm:$0xf]
  %v458 = vld [vmem:[%s4 + $0x24] sm:$0xf]
  %v459 = vld [vmem:[%s4 + $0x28] sm:$0xf]
  %v460 = vld [vmem:[%s4 + $0x2c] sm:$0xf]
  %v461 = vld [vmem:[%s4 + $0x30] sm:$0xf]
  %v462 = vld [vmem:[%s4 + $0x34] sm:$0xf]
  %v463 = vld [vmem:[%s4 + $0x38] sm:$0xf]
  %v464 = vld [vmem:[%s4 + $0x3c] sm:$0xf]
  %v465 = vld [vmem:[%s5] sm:$0x1]
  %v467 = vlaneseq
  %v468 = vshrl.u32 %v467, 7
  %v469 = vsub.s32 0, %v468
  %v470 = vrot.slane %v465, %v469
  %v488 = vunpack.c.l.b16 %v449
  %v489 = vunpack.c.l.b16 %v450
  %v490 = vunpack.c.l.b16 %v451
  %v491 = vunpack.c.l.b16 %v452
  %v492 = vunpack.c.l.b16 %v453
  %v493 = vunpack.c.l.b16 %v454
  %v494 = vunpack.c.l.b16 %v455
  %v495 = vunpack.c.l.b16 %v456
  %v496 = vunpack.c.l.b16 %v457
  %v497 = vunpack.c.l.b16 %v458
  %v498 = vunpack.c.l.b16 %v459
  %v499 = vunpack.c.l.b16 %v460
  %v500 = vunpack.c.l.b16 %v461
  %v501 = vunpack.c.l.b16 %v462
  %v502 = vunpack.c.l.b16 %v463
  %v503 = vunpack.c.l.b16 %v464
  %v504 = vpack.c.b16 %v489, %v488
  %v505 = vpack.c.b16 %v491, %v490
  %v506 = vpack.c.b16 %v493, %v492
  %v507 = vpack.c.b16 %v495, %v494
  %v508 = vpack.c.b16 %v497, %v496
  %v509 = vpack.c.b16 %v499, %v498
  %v510 = vpack.c.b16 %v501, %v500
  %v511 = vpack.c.b16 %v503, %v502
  %520 = vmatprep.subr.bf16.mxu0 0
  %521 = vmatpush1.bf16.msra.mxu0 %v504
  %522 = vmatprep.subr.bf16.mxu0 0
  %523 = vmatpush1.bf16.msra.mxu0 %v505
  %524 = vmatprep.subr.bf16.mxu0 0
  %525 = vmatpush1.bf16.msra.mxu0 %v506
  %526 = vmatprep.subr.bf16.mxu0 0
  %527 = vmatpush1.bf16.msra.mxu0 %v507
  %528 = vmatprep.subr.bf16.mxu0 0
  %529 = vmatpush1.bf16.msra.mxu0 %v508
  %530 = vmatprep.subr.bf16.mxu0 0
  %531 = vmatpush1.bf16.msra.mxu0 %v509
  %532 = vmatprep.subr.bf16.mxu0 0
  %533 = vmatpush1.bf16.msra.mxu0 %v510
  %534 = vmatprep.subr.bf16.mxu0 0
  %535 = vmatpush1.bf16.msra.mxu0 %v511
  %536 = vmatprep.subr.bf16.mxu0 0
  %537 = vmatpush1.bf16.msra.mxu0 0
  %538 = vmatprep.subr.bf16.mxu0 0
  %539 = vmatpush1.bf16.msra.mxu0 0
  %540 = vmatprep.subr.bf16.mxu0 0
  %541 = vmatpush1.bf16.msra.mxu0 0
  %542 = vmatprep.subr.bf16.mxu0 0
  %543 = vmatpush1.bf16.msra.mxu0 0
  %544 = vmatprep.subr.bf16.mxu0 0
  %545 = vmatpush1.bf16.msra.mxu0 0
  %546 = vmatprep.subr.bf16.mxu0 0
  %547 = vmatpush1.bf16.msra.mxu0 0
  %548 = vmatprep.subr.bf16.mxu0 0
  %549 = vmatpush1.bf16.msra.mxu0 0
  %550 = vmatprep.subr.bf16.mxu0 0
  %551 = vmatpush1.bf16.msra.mxu0 0
  %552 = vmatprep.mubr.bf16.mxu0 0
  %553 = vmatmul.mubr.bf16.gmra.mrb[0].mxu0 %v441
  %v554 = vpop.f32.mrb[0].mxu0
  %v555 = vadd.f32 %v470, %v554
  %v556 = vpop.f32.mrb[0].mxu0
  %v557 = vpop.f32.mrb[0].mxu0
  %v558 = vadd.f32 %v470, %v557
  %v559 = vpop.f32.mrb[0].mxu0
  %560 = vmatprep.mubr.bf16.mxu0 0
  %561 = vmatmul.mubr.bf16.gmra.mrb[0].mxu0 %v442
  %v562 = vpop.f32.mrb[0].mxu0
  %v563 = vadd.f32 %v470, %v562
  %v564 = vpop.f32.mrb[0].mxu0
  %v565 = vpop.f32.mrb[0].mxu0
  %v566 = vadd.f32 %v470, %v565
  %v567 = vpop.f32.mrb[0].mxu0
  %568 = vmatprep.mubr.bf16.mxu0 0
  %569 = vmatmul.mubr.bf16.gmra.mrb[0].mxu0 %v443
  %v570 = vpop.f32.mrb[0].mxu0
  %v571 = vadd.f32 %v470, %v570
  %v572 = vpop.f32.mrb[0].mxu0
  %v573 = vpop.f32.mrb[0].mxu0
  %v574 = vadd.f32 %v470, %v573
  %v575 = vpop.f32.mrb[0].mxu0
  %576 = vmatprep.mubr.bf16.mxu0 0
  %577 = vmatmul.mubr.bf16.gmra.mrb[0].mxu0 %v444
  %v578 = vpop.f32.mrb[0].mxu0
  %v579 = vadd.f32 %v470, %v578
  %v580 = vpop.f32.mrb[0].mxu0
  %v581 = vpop.f32.mrb[0].mxu0
  %v582 = vadd.f32 %v470, %v581
  %v583 = vpop.f32.mrb[0].mxu0
  %584 = vmatprep.mubr.bf16.mxu0 0
  %585 = vmatmul.mubr.bf16.gmra.mrb[0].mxu0 %v445
  %v586 = vpop.f32.mrb[0].mxu0
  %v587 = vadd.f32 %v470, %v586
  %v588 = vpop.f32.mrb[0].mxu0
  %v589 = vpop.f32.mrb[0].mxu0
  %v590 = vadd.f32 %v470, %v589
  %v591 = vpop.f32.mrb[0].mxu0
  %592 = vmatprep.mubr.bf16.mxu0 0
  %593 = vmatmul.mubr.bf16.gmra.mrb[0].mxu0 %v446
  %v594 = vpop.f32.mrb[0].mxu0
  %v595 = vadd.f32 %v470, %v594
  %v596 = vpop.f32.mrb[0].mxu0
  %v597 = vpop.f32.mrb[0].mxu0
  %v598 = vadd.f32 %v470, %v597
  %v599 = vpop.f32.mrb[0].mxu0
  %600 = vmatprep.mubr.bf16.mxu0 0
  %601 = vmatmul.mubr.bf16.gmra.mrb[0].mxu0 %v447
  %v602 = vpop.f32.mrb[0].mxu0
  %v603 = vadd.f32 %v470, %v602
  %v604 = vpop.f32.mrb[0].mxu0
  %v605 = vpop.f32.mrb[0].mxu0
  %v606 = vadd.f32 %v470, %v605
  %v607 = vpop.f32.mrb[0].mxu0
  %608 = vmatprep.mubr.bf16.mxu0 0
  %609 = vmatmul.mubr.bf16.gmra.mrb[0].mxu0 %v448
  %v610 = vpop.f32.mrb[0].mxu0
  %v611 = vadd.f32 %v470, %v610
  %v612 = vpop.f32.mrb[0].mxu0
  %v613 = vpop.f32.mrb[0].mxu0
  %v614 = vadd.f32 %v470, %v613
  %v615 = vpop.f32.mrb[0].mxu0
  %616 = vdwg.mxu0
  %v617 = vpack.c.bf16 %v558, %v555
  %v618 = vpack.c.bf16 %v566, %v563
  %v619 = vpack.c.bf16 %v574, %v571
  %v620 = vpack.c.bf16 %v582, %v579
  %v621 = vpack.c.bf16 %v590, %v587
  %v622 = vpack.c.bf16 %v598, %v595
  %v623 = vpack.c.bf16 %v606, %v603
  %v624 = vpack.c.bf16 %v614, %v611
  %625 = vmatprep.subr.bf16.mxu0 0
  %626 = vmatpush1.bf16.msra.mxu0 %v617
  %627 = vmatprep.subr.bf16.mxu0 0
  %628 = vmatpush1.bf16.msra.mxu0 %v618
  %629 = vmatprep.subr.bf16.mxu0 0
  %630 = vmatpush1.bf16.msra.mxu0 %v619
  %631 = vmatprep.subr.bf16.mxu0 0
  %632 = vmatpush1.bf16.msra.mxu0 %v620
  %633 = vmatprep.subr.bf16.mxu0 0
  %634 = vmatpush1.bf16.msra.mxu0 %v621
  %635 = vmatprep.subr.bf16.mxu0 0
  %636 = vmatpush1.bf16.msra.mxu0 %v622
  %637 = vmatprep.subr.bf16.mxu0 0
  %638 = vmatpush1.bf16.msra.mxu0 %v623
  %639 = vmatprep.subr.bf16.mxu0 0
  %640 = vmatpush1.bf16.msra.mxu0 %v624
  %641 = vmatprep.subr.bf16.mxu0 0
  %642 = vmatpush1.bf16.msra.mxu0 0
  %643 = vmatprep.subr.bf16.mxu0 0
  %644 = vmatpush1.bf16.msra.mxu0 0
  %645 = vmatprep.subr.bf16.mxu0 0
  %646 = vmatpush1.bf16.msra.mxu0 0
  %647 = vmatprep.subr.bf16.mxu0 0
  %648 = vmatpush1.bf16.msra.mxu0 0
  %649 = vmatprep.subr.bf16.mxu0 0
  %650 = vmatpush1.bf16.msra.mxu0 0
  %651 = vmatprep.subr.bf16.mxu0 0
  %652 = vmatpush1.bf16.msra.mxu0 0
  %653 = vmatprep.subr.bf16.mxu0 0
  %654 = vmatpush1.bf16.msra.mxu0 0
  %655 = vmatprep.subr.bf16.mxu0 0
  %656 = vmatpush1.bf16.msra.mxu0 0
  %657 = vmatprep.mubr.bf16.mxu0 0
  %658 = vmatmul.mubr.bf16.gmra.mrb[0].mxu0 %v312
  %v659 = vpop.f32.mrb[0].mxu0
  %v660 = vadd.f32 0.0, %v659
  %v661 = vpop.f32.mrb[0].mxu0
  %v662 = vpop.f32.mrb[0].mxu0
  %v663 = vadd.f32 0.0, %v662
  %v664 = vpop.f32.mrb[0].mxu0
  %665 = vmatprep.mubr.bf16.mxu0 0
  %666 = vmatmul.mubr.bf16.gmra.mrb[0].mxu0 %v313
  %v667 = vpop.f32.mrb[0].mxu0
  %v668 = vadd.f32 0.0, %v667
  %v669 = vpop.f32.mrb[0].mxu0
  %v670 = vpop.f32.mrb[0].mxu0
  %v671 = vadd.f32 0.0, %v670
  %v672 = vpop.f32.mrb[0].mxu0
  %673 = vmatprep.mubr.bf16.mxu0 0
  %674 = vmatmul.mubr.bf16.gmra.mrb[0].mxu0 %v314
  %v675 = vpop.f32.mrb[0].mxu0
  %v676 = vadd.f32 0.0, %v675
  %v677 = vpop.f32.mrb[0].mxu0
  %v678 = vpop.f32.mrb[0].mxu0
  %v679 = vadd.f32 0.0, %v678
  %v680 = vpop.f32.mrb[0].mxu0
  %681 = vmatprep.mubr.bf16.mxu0 0
  %682 = vmatmul.mubr.bf16.gmra.mrb[0].mxu0 %v315
  %v683 = vpop.f32.mrb[0].mxu0
  %v684 = vadd.f32 0.0, %v683
  %v685 = vpop.f32.mrb[0].mxu0
  %v686 = vpop.f32.mrb[0].mxu0
  %v687 = vadd.f32 0.0, %v686
  %v688 = vpop.f32.mrb[0].mxu0
  %689 = vmatprep.mubr.bf16.mxu0 0
  %690 = vmatmul.mubr.bf16.gmra.mrb[0].mxu0 %v316
  %v691 = vpop.f32.mrb[0].mxu0
  %v692 = vadd.f32 0.0, %v691
  %v693 = vpop.f32.mrb[0].mxu0
  %v694 = vpop.f32.mrb[0].mxu0
  %v695 = vadd.f32 0.0, %v694
  %v696 = vpop.f32.mrb[0].mxu0
  %697 = vmatprep.mubr.bf16.mxu0 0
  %698 = vmatmul.mubr.bf16.gmra.mrb[0].mxu0 %v317
  %v699 = vpop.f32.mrb[0].mxu0
  %v700 = vadd.f32 0.0, %v699
  %v701 = vpop.f32.mrb[0].mxu0
  %v702 = vpop.f32.mrb[0].mxu0
  %v703 = vadd.f32 0.0, %v702
  %v704 = vpop.f32.mrb[0].mxu0
  %705 = vmatprep.mubr.bf16.mxu0 0
  %706 = vmatmul.mubr.bf16.gmra.mrb[0].mxu0 %v318
  %v707 = vpop.f32.mrb[0].mxu0
  %v708 = vadd.f32 0.0, %v707
  %v709 = vpop.f32.mrb[0].mxu0
  %v710 = vpop.f32.mrb[0].mxu0
  %v711 = vadd.f32 0.0, %v710
  %v712 = vpop.f32.mrb[0].mxu0
  %713 = vmatprep.mubr.bf16.mxu0 0
  %714 = vmatmul.mubr.bf16.gmra.mrb[0].mxu0 %v319
  %v715 = vpop.f32.mrb[0].mxu0
  %v716 = vadd.f32 0.0, %v715
  %v717 = vpop.f32.mrb[0].mxu0
  %v718 = vpop.f32.mrb[0].mxu0
  %v719 = vadd.f32 0.0, %v718
  %v720 = vpop.f32.mrb[0].mxu0
  %721 = vdwg.mxu0
  %v722 = vlaneseq
  %v723 = vand.u32 %v722, 127
  %vm724 = vcmp.lt.s32.totalorder %v723, 8
  %v725 = vsel %vm724, %v660, -1e+30
  %v726 = vsel %vm724, %v663, -1e+30
  %v727 = vsel %vm724, %v668, -1e+30
  %v728 = vsel %vm724, %v671, -1e+30
  %v729 = vsel %vm724, %v676, -1e+30
  %v730 = vsel %vm724, %v679, -1e+30
  %v731 = vsel %vm724, %v684, -1e+30
  %v732 = vsel %vm724, %v687, -1e+30
  %v733 = vsel %vm724, %v692, -1e+30
  %v734 = vsel %vm724, %v695, -1e+30
  %v735 = vsel %vm724, %v700, -1e+30
  %v736 = vsel %vm724, %v703, -1e+30
  %v737 = vsel %vm724, %v708, -1e+30
  %v738 = vsel %vm724, %v711, -1e+30
  %v739 = vsel %vm724, %v716, -1e+30
  %v740 = vsel %vm724, %v719, -1e+30
  %741 = vmax.xlane.f32.xlu0 %v725
  %v742 = vpop.xlane.xlu0 %741
  %743 = vmax.xlane.f32.xlu0 %v726
  %v744 = vpop.xlane.xlu0 %743
  %745 = vmax.xlane.f32.xlu0 %v727
  %v746 = vpop.xlane.xlu0 %745
  %747 = vmax.xlane.f32.xlu0 %v728
  %v748 = vpop.xlane.xlu0 %747
  %749 = vmax.xlane.f32.xlu0 %v729
  %v750 = vpop.xlane.xlu0 %749
  %751 = vmax.xlane.f32.xlu0 %v730
  %v752 = vpop.xlane.xlu0 %751
  %753 = vmax.xlane.f32.xlu0 %v731
  %v754 = vpop.xlane.xlu0 %753
  %755 = vmax.xlane.f32.xlu0 %v732
  %v756 = vpop.xlane.xlu0 %755
  %757 = vmax.xlane.f32.xlu0 %v733
  %v758 = vpop.xlane.xlu0 %757
  %759 = vmax.xlane.f32.xlu0 %v734
  %v760 = vpop.xlane.xlu0 %759
  %761 = vmax.xlane.f32.xlu0 %v735
  %v762 = vpop.xlane.xlu0 %761
  %763 = vmax.xlane.f32.xlu0 %v736
  %v764 = vpop.xlane.xlu0 %763
  %765 = vmax.xlane.f32.xlu0 %v737
  %v766 = vpop.xlane.xlu0 %765
  %767 = vmax.xlane.f32.xlu0 %v738
  %v768 = vpop.xlane.xlu0 %767
  %769 = vmax.xlane.f32.xlu0 %v739
  %v770 = vpop.xlane.xlu0 %769
  %771 = vmax.xlane.f32.xlu0 %v740
  %v772 = vpop.xlane.xlu0 %771
  %v773 = vsub.f32 %v725, %v742
  %v774 = vsub.f32 %v726, %v744
  %v775 = vsub.f32 %v727, %v746
  %v776 = vsub.f32 %v728, %v748
  %v777 = vsub.f32 %v729, %v750
  %v778 = vsub.f32 %v730, %v752
  %v779 = vsub.f32 %v731, %v754
  %v780 = vsub.f32 %v732, %v756
  %v781 = vsub.f32 %v733, %v758
  %v782 = vsub.f32 %v734, %v760
  %v783 = vsub.f32 %v735, %v762
  %v784 = vsub.f32 %v736, %v764
  %v785 = vsub.f32 %v737, %v766
  %v786 = vsub.f32 %v738, %v768
  %v787 = vsub.f32 %v739, %v770
  %v788 = vsub.f32 %v740, %v772
  %v789 = vmul.f32 %v773, 1.442695
  %v790 = vpow.pop %v789
  %v791 = vmul.f32 %v774, 1.442695
  %v792 = vpow.pop %v791
  %v793 = vmul.f32 %v775, 1.442695
  %v794 = vpow.pop %v793
  %v795 = vmul.f32 %v776, 1.442695
  %v796 = vpow.pop %v795
  %v797 = vmul.f32 %v777, 1.442695
  %v798 = vpow.pop %v797
  %v799 = vmul.f32 %v778, 1.442695
  %v800 = vpow.pop %v799
  %v801 = vmul.f32 %v779, 1.442695
  %v802 = vpow.pop %v801
  %v803 = vmul.f32 %v780, 1.442695
  %v804 = vpow.pop %v803
  %v805 = vmul.f32 %v781, 1.442695
  %v806 = vpow.pop %v805
  %v807 = vmul.f32 %v782, 1.442695
  %v808 = vpow.pop %v807
  %v809 = vmul.f32 %v783, 1.442695
  %v810 = vpow.pop %v809
  %v811 = vmul.f32 %v784, 1.442695
  %v812 = vpow.pop %v811
  %v813 = vmul.f32 %v785, 1.442695
  %v814 = vpow.pop %v813
  %v815 = vmul.f32 %v786, 1.442695
  %v816 = vpow.pop %v815
  %v817 = vmul.f32 %v787, 1.442695
  %v818 = vpow.pop %v817
  %v819 = vmul.f32 %v788, 1.442695
  %v820 = vpow.pop %v819
  %821 = vadd.xlane.f32.xlu0 %v790
  %v822 = vpop.xlane.xlu0 %821
  %823 = vadd.xlane.f32.xlu0 %v792
  %v824 = vpop.xlane.xlu0 %823
  %825 = vadd.xlane.f32.xlu0 %v794
  %v826 = vpop.xlane.xlu0 %825
  %827 = vadd.xlane.f32.xlu0 %v796
  %v828 = vpop.xlane.xlu0 %827
  %829 = vadd.xlane.f32.xlu0 %v798
  %v830 = vpop.xlane.xlu0 %829
  %831 = vadd.xlane.f32.xlu0 %v800
  %v832 = vpop.xlane.xlu0 %831
  %833 = vadd.xlane.f32.xlu0 %v802
  %v834 = vpop.xlane.xlu0 %833
  %835 = vadd.xlane.f32.xlu0 %v804
  %v836 = vpop.xlane.xlu0 %835
  %837 = vadd.xlane.f32.xlu0 %v806
  %v838 = vpop.xlane.xlu0 %837
  %839 = vadd.xlane.f32.xlu0 %v808
  %v840 = vpop.xlane.xlu0 %839
  %841 = vadd.xlane.f32.xlu0 %v810
  %v842 = vpop.xlane.xlu0 %841
  %843 = vadd.xlane.f32.xlu0 %v812
  %v844 = vpop.xlane.xlu0 %843
  %845 = vadd.xlane.f32.xlu0 %v814
  %v846 = vpop.xlane.xlu0 %845
  %847 = vadd.xlane.f32.xlu0 %v816
  %v848 = vpop.xlane.xlu0 %847
  %849 = vadd.xlane.f32.xlu0 %v818
  %v850 = vpop.xlane.xlu0 %849
  %851 = vadd.xlane.f32.xlu0 %v820
  %v852 = vpop.xlane.xlu0 %851
  %v853 = vlog2.pop %v822
  %v854 = vmul.f32 %v853, 0.6931472
  %v855 = vlog2.pop %v824
  %v856 = vmul.f32 %v855, 0.6931472
  %v857 = vlog2.pop %v826
  %v858 = vmul.f32 %v857, 0.6931472
  %v859 = vlog2.pop %v828
  %v860 = vmul.f32 %v859, 0.6931472
  %v861 = vlog2.pop %v830
  %v862 = vmul.f32 %v861, 0.6931472
  %v863 = vlog2.pop %v832
  %v864 = vmul.f32 %v863, 0.6931472
  %v865 = vlog2.pop %v834
  %v866 = vmul.f32 %v865, 0.6931472
  %v867 = vlog2.pop %v836
  %v868 = vmul.f32 %v867, 0.6931472
  %v869 = vlog2.pop %v838
  %v870 = vmul.f32 %v869, 0.6931472
  %v871 = vlog2.pop %v840
  %v872 = vmul.f32 %v871, 0.6931472
  %v873 = vlog2.pop %v842
  %v874 = vmul.f32 %v873, 0.6931472
  %v875 = vlog2.pop %v844
  %v876 = vmul.f32 %v875, 0.6931472
  %v877 = vlog2.pop %v846
  %v878 = vmul.f32 %v877, 0.6931472
  %v879 = vlog2.pop %v848
  %v880 = vmul.f32 %v879, 0.6931472
  %v881 = vlog2.pop %v850
  %v882 = vmul.f32 %v881, 0.6931472
  %v883 = vlog2.pop %v852
  %v884 = vmul.f32 %v883, 0.6931472
  %v885 = vsub.f32 %v773, %v854
  %v886 = vsub.f32 %v774, %v856
  %v887 = vsub.f32 %v775, %v858
  %v888 = vsub.f32 %v776, %v860
  %v889 = vsub.f32 %v777, %v862
  %v890 = vsub.f32 %v778, %v864
  %v891 = vsub.f32 %v779, %v866
  %v892 = vsub.f32 %v780, %v868
  %v893 = vsub.f32 %v781, %v870
  %v894 = vsub.f32 %v782, %v872
  %v895 = vsub.f32 %v783, %v874
  %v896 = vsub.f32 %v784, %v876
  %v897 = vsub.f32 %v785, %v878
  %v898 = vsub.f32 %v786, %v880
  %v899 = vsub.f32 %v787, %v882
  %v900 = vsub.f32 %v788, %v884
  %901 = vst [vmem:[%s6] sm:$0xff] %v885
  %902 = vst [vmem:[%s6 + $0x8] sm:$0xff] %v886
  %903 = vst [vmem:[%s6 + $0x10] sm:$0xff] %v887
  %904 = vst [vmem:[%s6 + $0x18] sm:$0xff] %v888
  %905 = vst [vmem:[%s6 + $0x20] sm:$0xff] %v889
  %906 = vst [vmem:[%s6 + $0x28] sm:$0xff] %v890
  %907 = vst [vmem:[%s6 + $0x30] sm:$0xff] %v891
  %908 = vst [vmem:[%s6 + $0x38] sm:$0xff] %v892
  %909 = vst [vmem:[%s6 + $0x40] sm:$0xff] %v893
  %910 = vst [vmem:[%s6 + $0x48] sm:$0xff] %v894
  %911 = vst [vmem:[%s6 + $0x50] sm:$0xff] %v895
  %912 = vst [vmem:[%s6 + $0x58] sm:$0xff] %v896
  %913 = vst [vmem:[%s6 + $0x60] sm:$0xff] %v897
  %914 = vst [vmem:[%s6 + $0x68] sm:$0xff] %v898
  %915 = vst [vmem:[%s6 + $0x70] sm:$0xff] %v899
  %916 = vst [vmem:[%s6 + $0x78] sm:$0xff] %v900
  // Predicated region
  $region26: #{gcn_forward.1} parent=0 // pred_check
    _
  $region27: #{gcn_forward.1} parent=0 // pred_check_branch
    %918 = sbr.rel (0) target = $region29
  $region28: #{gcn_forward.1} parent=0 // pred_region
    _
  $region29: #{gcn_forward.1} parent=0 // pred_fallthru
    _
  // Predicated region
  $region30: #{gcn_forward.1} parent=0 // pred_check
    _
  $region31: #{gcn_forward.1} parent=0 // pred_check_branch
    %920 = sbr.rel (0) target = $region33
  $region32: #{gcn_forward.1} parent=0 // pred_region
    _
  $region33: #{gcn_forward.1} parent=0 // pred_fallthru
    _

</llo_original>
